<compile_context>
chip_gen: v6e
topology: v6e:2x2x1
jax: 0.10.0
libtpu: 0.0.40
codegen_flags: <defaults>
</compile_context>

<pallas_src>
import functools

import jax
import jax.numpy as jnp
from jax.experimental import pallas as pl
from jax.experimental.pallas import tpu as pltpu


# ------------------------------- the kernel --------------------------------

def _hardswish(x):
    # x * relu6(x + 3) / 6  — pure VPU elementwise.
    return x * jnp.clip(x + 3.0, 0.0, 6.0) * (1.0 / 6.0)


def ffn_kernel(x_ref, w1_ref, b1_ref, w2_ref, b2_ref, o_ref):
    # (tm, D) @ (D, H) -> (tm, H)
    h = jnp.dot(x_ref[...], w1_ref[...],
                preferred_element_type=jnp.float32) + b1_ref[...]
    h = _hardswish(h)
    # (tm, H) @ (H, D) -> (tm, D)
    y = jnp.dot(h, w2_ref[...],
                preferred_element_type=jnp.float32) + b2_ref[...]
    o_ref[...] = y.astype(o_ref.dtype)


# ------------------------------ host wrapper --------------------------------

def _round_up(x, m):
    return ((x + m - 1) // m) * m


def feedforward(x, w1, b1, w2, b2, *, tile_m=128):
    """Applies Linear(D->H) -> Hardswish -> Linear(H->D) over the last dim of x.

    x:  (..., D)
    w1: (D, H),  b1: (1, H)
    w2: (H, D),  b2: (1, D)
    """
    orig_shape = x.shape
    D = orig_shape[-1]
    H = w1.shape[-1]
    assert w1.shape == (D, H) and w2.shape == (H, D)

    x2 = x.reshape(-1, D).astype(jnp.float32)
    M = x2.shape[0]

    # Row tile: multiple of 8 (sublane), capped at tile_m; pad M up to a
    # multiple of the tile so the grid divides evenly.
    tm = min(tile_m, _round_up(M, 8))
    Mp = _round_up(M, tm)
    if Mp != M:
        x2 = jnp.pad(x2, ((0, Mp - M), (0, 0)))

    grid = (Mp // tm,)

    out = pl.pallas_call(
        ffn_kernel,
        out_shape=jax.ShapeDtypeStruct((Mp, D), jnp.float32),
        grid_spec=pltpu.PrefetchScalarGridSpec(
            num_scalar_prefetch=0,
            grid=grid,
            in_specs=[
                pl.BlockSpec((tm, D), lambda i: (i, 0)),   # x rows: tiled
                pl.BlockSpec((D, H), lambda i: (0, 0)),    # w1: resident
                pl.BlockSpec((1, H), lambda i: (0, 0)),    # b1: resident
                pl.BlockSpec((H, D), lambda i: (0, 0)),    # w2: resident
                pl.BlockSpec((1, D), lambda i: (0, 0)),    # b2: resident
            ],
            out_specs=pl.BlockSpec((tm, D), lambda i: (i, 0)),
        ),
        compiler_params=pltpu.CompilerParams(
            dimension_semantics=("parallel",),   # v7x: split row tiles over 2 TCs
        ),
    )(x2, w1, b1, w2, b2)

    return out[:M].reshape(orig_shape)


# --------------------------- parameter utilities ----------------------------

def _linear_init(key, fan_in, fan_out):
    # Mimic torch.nn.Linear default init: U(-1/sqrt(fan_in), 1/sqrt(fan_in)).
    kw, kb = jax.random.split(key)
    bound = 1.0 / (fan_in ** 0.5)
    w = jax.random.uniform(kw, (fan_in, fan_out), jnp.float32, -bound, bound)
    b = jax.random.uniform(kb, (1, fan_out), jnp.float32, -bound, bound)
    return w, b


def init_params(key, *, embed_dim, hidden_dim):
    k1, k2 = jax.random.split(key)
    w1, b1 = _linear_init(k1, embed_dim, hidden_dim)
    w2, b2 = _linear_init(k2, hidden_dim, embed_dim)
    return {"w1": w1, "b1": b1, "w2": w2, "b2": b2}


def feedforward_reference(x, p):
    h = x @ p["w1"] + p["b1"]
    h = h * jnp.clip(h + 3.0, 0.0, 6.0) / 6.0
    return h @ p["w2"] + p["b2"]


# ---------------------------------- main ------------------------------------

if __name__ == "__main__":
    BATCH, SEQ = 2, 8
    EMBED_DIM = 32
    HIDDEN_DIM = 64

    key = jax.random.PRNGKey(0)
    k_in, k_par = jax.random.split(key)

    x = jax.random.normal(k_in, (BATCH, SEQ, EMBED_DIM), jnp.float32)
    params = init_params(k_par, embed_dim=EMBED_DIM, hidden_dim=HIDDEN_DIM)

    y = feedforward(x, params["w1"], params["b1"], params["w2"], params["b2"])
    y = jax.block_until_ready(y)

    assert y.shape == (BATCH, SEQ, EMBED_DIM)

    # Numeric sanity check against a pure-JAX reference.
    y_ref = feedforward_reference(x.reshape(-1, EMBED_DIM), params).reshape(x.shape)
    assert jnp.allclose(y, y_ref, atol=1e-5, rtol=1e-5), "mismatch vs reference"

    print("KERNEL_OK")
</pallas_src>

<mosaic_0001>
module attributes {stable_mosaic.version = 11 : i64} {
  func.func @ffn_kernel(%arg0: i32, %arg1: memref<16x32xf32, #tpu.memory_space<vmem>>, %arg2: memref<32x64xf32, #tpu.memory_space<vmem>>, %arg3: memref<1x64xf32, #tpu.memory_space<vmem>>, %arg4: memref<64x32xf32, #tpu.memory_space<vmem>>, %arg5: memref<1x32xf32, #tpu.memory_space<vmem>>, %arg6: memref<16x32xf32, #tpu.memory_space<vmem>>) attributes {dimension_semantics = [#tpu.dimension_semantics<parallel>], iteration_bounds = array<i64: 1>, scalar_prefetch = 0 : i64, scratch_operands = 0 : i64, tpu.core_type = #tpu.core_type<tc>, window_params = [{transform_indices = @transform_0, window_bounds = array<i64: 16, 32>}, {pipeline_mode = #tpu.pipeline_mode<synchronous>, transform_indices = @transform_1, window_bounds = array<i64: 32, 64>}, {pipeline_mode = #tpu.pipeline_mode<synchronous>, transform_indices = @transform_2, window_bounds = array<i64: 1, 64>}, {pipeline_mode = #tpu.pipeline_mode<synchronous>, transform_indices = @transform_3, window_bounds = array<i64: 64, 32>}, {pipeline_mode = #tpu.pipeline_mode<synchronous>, transform_indices = @transform_4, window_bounds = array<i64: 1, 32>}, {transform_indices = @transform_5, window_bounds = array<i64: 16, 32>}]} {
    %c0 = arith.constant 0 : index
    %c0_0 = arith.constant 0 : index
    %0 = vector.load %arg1[%c0, %c0_0] : memref<16x32xf32, #tpu.memory_space<vmem>>, vector<16x32xf32>
    %c0_1 = arith.constant 0 : index
    %c0_2 = arith.constant 0 : index
    %1 = vector.load %arg2[%c0_1, %c0_2] : memref<32x64xf32, #tpu.memory_space<vmem>>, vector<32x64xf32>
    %cst = arith.constant dense<0.000000e+00> : vector<16x64xf32>
    %2 = tpu.matmul %0, %1, %cst {dimension_numbers = #tpu.dot_dimension_numbers<[1], [0], [0], [1], [0, 0, 1, 1], [], []>} : vector<16x32xf32>, vector<32x64xf32>, vector<16x64xf32> -> vector<16x64xf32>
    %c0_3 = arith.constant 0 : index
    %c0_4 = arith.constant 0 : index
    %3 = vector.load %arg3[%c0_3, %c0_4] : memref<1x64xf32, #tpu.memory_space<vmem>>, vector<1x64xf32>
    %4 = vector.broadcast %3 : vector<1x64xf32> to vector<16x64xf32>
    %5 = arith.addf %2, %4 : vector<16x64xf32>
    %cst_5 = arith.constant 3.000000e+00 : f32
    %6 = vector.broadcast %cst_5 : f32 to vector<16x64xf32>
    %7 = arith.addf %5, %6 : vector<16x64xf32>
    %cst_6 = arith.constant 0.000000e+00 : f32
    %cst_7 = arith.constant 6.000000e+00 : f32
    %8 = vector.broadcast %cst_6 : f32 to vector<16x64xf32>
    %9 = arith.maximumf %8, %7 : vector<16x64xf32>
    %10 = vector.broadcast %cst_7 : f32 to vector<16x64xf32>
    %11 = arith.minimumf %10, %9 : vector<16x64xf32>
    %12 = arith.mulf %5, %11 : vector<16x64xf32>
    %cst_8 = arith.constant 0.166666672 : f32
    %13 = vector.broadcast %cst_8 : f32 to vector<16x64xf32>
    %14 = arith.mulf %12, %13 : vector<16x64xf32>
    %c0_9 = arith.constant 0 : index
    %c0_10 = arith.constant 0 : index
    %15 = vector.load %arg4[%c0_9, %c0_10] : memref<64x32xf32, #tpu.memory_space<vmem>>, vector<64x32xf32>
    %cst_11 = arith.constant dense<0.000000e+00> : vector<16x32xf32>
    %16 = tpu.matmul %14, %15, %cst_11 {dimension_numbers = #tpu.dot_dimension_numbers<[1], [0], [0], [1], [0, 0, 1, 1], [], []>} : vector<16x64xf32>, vector<64x32xf32>, vector<16x32xf32> -> vector<16x32xf32>
    %c0_12 = arith.constant 0 : index
    %c0_13 = arith.constant 0 : index
    %17 = vector.load %arg5[%c0_12, %c0_13] : memref<1x32xf32, #tpu.memory_space<vmem>>, vector<1x32xf32>
    %18 = vector.broadcast %17 : vector<1x32xf32> to vector<16x32xf32>
    %19 = arith.addf %16, %18 : vector<16x32xf32>
    %c0_14 = arith.constant 0 : index
    %c0_15 = arith.constant 0 : index
    %20 = vector.load %arg6[%c0_14, %c0_15] : memref<16x32xf32, #tpu.memory_space<vmem>>, vector<16x32xf32>
    tpu.vector_store %arg6[%c0_14, %c0_15], %19 {strides = array<i32>} : memref<16x32xf32, #tpu.memory_space<vmem>>, vector<16x32xf32>,
    return
  }
  func.func @transform_0(%arg0: i32) -> (i32, i32) {
    %c0_i32 = arith.constant 0 : i32
    %c0_i32_0 = arith.constant 0 : i32
    return %arg0, %c0_i32 : i32, i32
  }
  func.func @transform_1(%arg0: i32) -> (i32, i32) {
    %c0_i32 = arith.constant 0 : i32
    %c0_i32_0 = arith.constant 0 : i32
    %c0_i32_1 = arith.constant 0 : i32
    return %c0_i32, %c0_i32_0 : i32, i32
  }
  func.func @transform_2(%arg0: i32) -> (i32, i32) {
    %c0_i32 = arith.constant 0 : i32
    %c0_i32_0 = arith.constant 0 : i32
    %c0_i32_1 = arith.constant 0 : i32
    return %c0_i32, %c0_i32_0 : i32, i32
  }
  func.func @transform_3(%arg0: i32) -> (i32, i32) {
    %c0_i32 = arith.constant 0 : i32
    %c0_i32_0 = arith.constant 0 : i32
    %c0_i32_1 = arith.constant 0 : i32
    return %c0_i32, %c0_i32_0 : i32, i32
  }
  func.func @transform_4(%arg0: i32) -> (i32, i32) {
    %c0_i32 = arith.constant 0 : i32
    %c0_i32_0 = arith.constant 0 : i32
    %c0_i32_1 = arith.constant 0 : i32
    return %c0_i32, %c0_i32_0 : i32, i32
  }
  func.func @transform_5(%arg0: i32) -> (i32, i32) {
    %c0_i32 = arith.constant 0 : i32
    %c0_i32_0 = arith.constant 0 : i32
    return %arg0, %c0_i32 : i32, i32
  }
}

</mosaic_0001>

<llo_original>
// kernel: tpu_custom_call.1
$region0: #{tpu_custom_call.1}
  #allocation0 [shape = 'u32[]', space=smem, size = 0x4, offset = 0x4, fixed_abs, tag = 'smem constant byte address 0x4 - core index']
  #allocation1 [shape = 'u32[144,128]{1,0:T(1,128)}', space=vmem, size = 0x12000, scoped, tag = 'internal scratch']
  %s0 = inlined_call_operand.vmem [shape: f32[16,32], index: 0, kind: input, shape index: {}]
  %s1 = inlined_call_operand.vmem [shape: f32[32,64], index: 1, kind: input, shape index: {}]
  %s2 = inlined_call_operand.vmem [shape: f32[1,64], index: 2, kind: input, shape index: {}]
  %s3 = inlined_call_operand.vmem [shape: f32[64,32], index: 3, kind: input, shape index: {}]
  %s4 = inlined_call_operand.vmem [shape: f32[1,32], index: 4, kind: input, shape index: {}]
  %s5 = inlined_call_operand.hbm [shape: f32[16,32], index: 5, kind: output, shape index: {}]
  %s6 = sld [smem:[#allocation0]]
  $region30: #{tpu_custom_call.1} parent=0
    _
  %s8 = ssub.s32 1, %s6
  %s9 = scalar_select 0, %s8, %s6
  $region1: #{tpu_custom_call.1} parent=0
    #allocation2 [shape = 'u8[8192]{0}', space=vmem, size = 0x2000, scoped, tag = 'output window, operand 0, single buffered']
    #allocation3 [shape = 's32[1]{0}', space=sflag, size = 0x4, scoped, tag = 'scoped memory for tpu_custom_call.1']
    %10 = vsyncpa [#allocation3], 0
    // Predicated region
    $region2: #{tpu_custom_call.1} parent=1 // pred_check
      _
    $region3: #{tpu_custom_call.1} parent=1 // pred_check_branch
      %12 = sbr.rel (0) target = $region5
    $region4: #{tpu_custom_call.1} parent=1 // pred_region
      _
    $region5: #{tpu_custom_call.1} parent=1 // pred_fallthru
      _
    // Predicated region
    $region6: #{tpu_custom_call.1} parent=1 // pred_check
      _
    $region7: #{tpu_custom_call.1} parent=1 // pred_check_branch
      %14 = sbr.rel (0) target = $region9
    $region8: #{tpu_custom_call.1} parent=1 // pred_region
      _
    $region9: #{tpu_custom_call.1} parent=1 // pred_fallthru
      _
    // Predicated region
    $region10: #{tpu_custom_call.1} parent=1 // pred_check
      _
    $region11: #{tpu_custom_call.1} parent=1 // pred_check_branch
      %16 = sbr.rel (0) target = $region13
    $region12: #{tpu_custom_call.1} parent=1 // pred_region
      _
    $region13: #{tpu_custom_call.1} parent=1 // pred_fallthru
      _
    // Predicated region
    $region14: #{tpu_custom_call.1} parent=1 // pred_check
      _
    $region15: #{tpu_custom_call.1} parent=1 // pred_check_branch
      %18 = sbr.rel (0) target = $region17
    $region16: #{tpu_custom_call.1} parent=1 // pred_region
      _
    $region17: #{tpu_custom_call.1} parent=1 // pred_fallthru
      _
    // Predicated region
    $region18: #{tpu_custom_call.1} parent=1 // pred_check
      _
    $region19: #{tpu_custom_call.1} parent=1 // pred_check_branch
      %20 = sbr.rel (0) target = $region21
    $region20: #{tpu_custom_call.1} parent=1 // pred_region
      _
    $region21: #{tpu_custom_call.1} parent=1 // pred_fallthru
      _
    %v21 = vld [vmem:[%s0] sm:$0xff]
    %v22 = vld [vmem:[%s0 + $0x8] sm:$0xff]
    %v23 = vld [vmem:[%s1] sm:$0xff]
    %v24 = vld [vmem:[%s1 + $0x8] sm:$0xff]
    %v25 = vld [vmem:[%s1 + $0x10] sm:$0xff]
    %v26 = vld [vmem:[%s1 + $0x18] sm:$0xff]
    %v27 = vld [vmem:[%s2] sm:$0x1]
    %v29 = vlaneseq
    %v30 = vshrl.u32 %v29, 7
    %v31 = vsub.s32 0, %v30
    %v32 = vrot.slane %v27, %v31
    %vm34 = vcmask 261120
    %v36 = vsel %vm34, %v21, 0
    %v39 = vsel %vm34, %v22, 0
    %41 = vmatprep.subr.mxu0 0.0
    %42 = vmatpush1.msra.mxu0 0.0
    %43 = vmatprep.subr.mxu0 0.0
    %44 = vmatpush1.msra.mxu0 0.0
    %45 = vmatprep.subr.mxu0 0.0
    %46 = vmatpush1.msra.mxu0 0.0
    %47 = vmatprep.subr.mxu0 0.0
    %48 = vmatpush1.msra.mxu0 0.0
    %49 = vmatprep.subr.mxu0 0.0
    %50 = vmatpush1.msra.mxu0 0.0
    %51 = vmatprep.subr.mxu0 0.0
    %52 = vmatpush1.msra.mxu0 0.0
    %53 = vmatprep.subr.mxu0 0.0
    %54 = vmatpush1.msra.mxu0 0.0
    %55 = vmatprep.subr.mxu0 0.0
    %56 = vmatpush1.msra.mxu0 0.0
    %57 = vmatprep.subr.mxu0 0.0
    %58 = vmatpush1.msra.mxu0 0.0
    %59 = vmatprep.subr.mxu0 0.0
    %60 = vmatpush1.msra.mxu0 0.0
    %61 = vmatprep.subr.mxu0 0.0
    %62 = vmatpush1.msra.mxu0 0.0
    %63 = vmatprep.subr.mxu0 0.0
    %64 = vmatpush1.msra.mxu0 0.0
    %65 = vmatprep.subr.mxu0 0.0
    %66 = vmatpush1.msra.mxu0 %v26
    %67 = vmatprep.subr.mxu0 0.0
    %68 = vmatpush1.msra.mxu0 %v25
    %69 = vmatprep.subr.mxu0 0.0
    %70 = vmatpush1.msra.mxu0 %v24
    %71 = vmatprep.subr.mxu0 0.0
    %72 = vmatpush1.msra.mxu0 %v23
    %73 = vmatprep.subr.mxu0 0.0
    %74 = vmatpush2.msra.mxu0 0.0
    %75 = vmatprep.subr.mxu0 0.0
    %76 = vmatpush2.msra.mxu0 0.0
    %77 = vmatprep.subr.mxu0 0.0
    %78 = vmatpush2.msra.mxu0 0.0
    %79 = vmatprep.subr.mxu0 0.0
    %80 = vmatpush2.msra.mxu0 0.0
    %81 = vmatprep.subr.mxu0 0.0
    %82 = vmatpush2.msra.mxu0 0.0
    %83 = vmatprep.subr.mxu0 0.0
    %84 = vmatpush2.msra.mxu0 0.0
    %85 = vmatprep.subr.mxu0 0.0
    %86 = vmatpush2.msra.mxu0 0.0
    %87 = vmatprep.subr.mxu0 0.0
    %88 = vmatpush2.msra.mxu0 0.0
    %89 = vmatprep.subr.mxu0 0.0
    %90 = vmatpush2.msra.mxu0 0.0
    %91 = vmatprep.subr.mxu0 0.0
    %92 = vmatpush2.msra.mxu0 0.0
    %93 = vmatprep.subr.mxu0 0.0
    %94 = vmatpush2.msra.mxu0 0.0
    %95 = vmatprep.subr.mxu0 0.0
    %96 = vmatpush2.msra.mxu0 0.0
    %97 = vmatprep.subr.mxu0 0.0
    %98 = vmatpush2.msra.mxu0 0.0
    %99 = vmatprep.subr.mxu0 0.0
    %100 = vmatpush2.msra.mxu0 0.0
    %101 = vmatprep.subr.mxu0 0.0
    %102 = vmatpush2.msra.mxu0 0.0
    %103 = vmatprep.subr.mxu0 0.0
    %104 = vmatpush2.msra.mxu0 0.0
    %105 = vmatprep.mubr.f32.mxu0 0.0
    %106 = vmatmul.mubr.f32.gmra.mxu0 %v36
    %v107 = vpop.f32.mrf.mxu0
    %v108 = vadd.f32 %v32, %v107
    %v109 = vpop.f32.mrf.mxu0
    %110 = vmatprep.mubr.f32.mxu0 0.0
    %111 = vmatmul.mubr.f32.gmra.mxu0 %v39
    %v112 = vpop.f32.mrf.mxu0
    %v113 = vadd.f32 %v32, %v112
    %v114 = vpop.f32.mrf.mxu0
    %115 = vdwg.mxu0
    %v116 = vadd.f32 %v108, 3.0
    %v117 = vadd.f32 %v113, 3.0
    %v118 = vmax.f32 %v116, 0.0
    %v119 = vmax.f32 %v117, 0.0
    %v120 = vmin.f32 %v118, 6.0
    %v121 = vmin.f32 %v119, 6.0
    %v122 = vmul.f32 %v108, %v120
    %v123 = vmul.f32 %v113, %v121
    %v124 = vmul.f32 %v122, 0.16666667
    %v125 = vmul.f32 %v123, 0.16666667
    %v126 = vld [vmem:[%s3] sm:$0xff]
    %v127 = vld [vmem:[%s3 + $0x8] sm:$0xff]
    %v128 = vld [vmem:[%s3 + $0x10] sm:$0xff]
    %v129 = vld [vmem:[%s3 + $0x18] sm:$0xff]
    %v130 = vld [vmem:[%s3 + $0x20] sm:$0xff]
    %v131 = vld [vmem:[%s3 + $0x28] sm:$0xff]
    %v132 = vld [vmem:[%s3 + $0x30] sm:$0xff]
    %v133 = vld [vmem:[%s3 + $0x38] sm:$0xff]
    %v134 = vld [vmem:[%s4] sm:$0x1]
    %v136 = vlaneseq
    %v137 = vshrl.u32 %v136, 7
    %v138 = vsub.s32 0, %v137
    %v139 = vrot.slane %v134, %v138
    %vm141 = vcmask 523264
    %v143 = vsel %vm141, %v124, 0
    %v146 = vsel %vm141, %v125, 0
    %148 = vmatprep.subr.mxu0 0.0
    %149 = vmatpush1.msra.mxu0 0.0
    %150 = vmatprep.subr.mxu0 0.0
    %151 = vmatpush1.msra.mxu0 0.0
    %152 = vmatprep.subr.mxu0 0.0
    %153 = vmatpush1.msra.mxu0 0.0
    %154 = vmatprep.subr.mxu0 0.0
    %155 = vmatpush1.msra.mxu0 0.0
    %156 = vmatprep.subr.mxu0 0.0
    %157 = vmatpush1.msra.mxu0 0.0
    %158 = vmatprep.subr.mxu0 0.0
    %159 = vmatpush1.msra.mxu0 0.0
    %160 = vmatprep.subr.mxu0 0.0
    %161 = vmatpush1.msra.mxu0 0.0
    %162 = vmatprep.subr.mxu0 0.0
    %163 = vmatpush1.msra.mxu0 0.0
    %164 = vmatprep.subr.mxu0 0.0
    %165 = vmatpush1.msra.mxu0 %v133
    %166 = vmatprep.subr.mxu0 0.0
    %167 = vmatpush1.msra.mxu0 %v132
    %168 = vmatprep.subr.mxu0 0.0
    %169 = vmatpush1.msra.mxu0 %v131
    %170 = vmatprep.subr.mxu0 0.0
    %171 = vmatpush1.msra.mxu0 %v130
    %172 = vmatprep.subr.mxu0 0.0
    %173 = vmatpush1.msra.mxu0 %v129
    %174 = vmatprep.subr.mxu0 0.0
    %175 = vmatpush1.msra.mxu0 %v128
    %176 = vmatprep.subr.mxu0 0.0
    %177 = vmatpush1.msra.mxu0 %v127
    %178 = vmatprep.subr.mxu0 0.0
    %179 = vmatpush1.msra.mxu0 %v126
    %180 = vmatprep.subr.mxu0 0.0
    %181 = vmatpush2.msra.mxu0 0.0
    %182 = vmatprep.subr.mxu0 0.0
    %183 = vmatpush2.msra.mxu0 0.0
    %184 = vmatprep.subr.mxu0 0.0
    %185 = vmatpush2.msra.mxu0 0.0
    %186 = vmatprep.subr.mxu0 0.0
    %187 = vmatpush2.msra.mxu0 0.0
    %188 = vmatprep.subr.mxu0 0.0
    %189 = vmatpush2.msra.mxu0 0.0
    %190 = vmatprep.subr.mxu0 0.0
    %191 = vmatpush2.msra.mxu0 0.0
    %192 = vmatprep.subr.mxu0 0.0
    %193 = vmatpush2.msra.mxu0 0.0
    %194 = vmatprep.subr.mxu0 0.0
    %195 = vmatpush2.msra.mxu0 0.0
    %196 = vmatprep.subr.mxu0 0.0
    %197 = vmatpush2.msra.mxu0 0.0
    %198 = vmatprep.subr.mxu0 0.0
    %199 = vmatpush2.msra.mxu0 0.0
    %200 = vmatprep.subr.mxu0 0.0
    %201 = vmatpush2.msra.mxu0 0.0
    %202 = vmatprep.subr.mxu0 0.0
    %203 = vmatpush2.msra.mxu0 0.0
    %204 = vmatprep.subr.mxu0 0.0
    %205 = vmatpush2.msra.mxu0 0.0
    %206 = vmatprep.subr.mxu0 0.0
    %207 = vmatpush2.msra.mxu0 0.0
    %208 = vmatprep.subr.mxu0 0.0
    %209 = vmatpush2.msra.mxu0 0.0
    %210 = vmatprep.subr.mxu0 0.0
    %211 = vmatpush2.msra.mxu0 0.0
    %212 = vmatprep.mubr.f32.mxu0 0.0
    %213 = vmatmul.mubr.f32.gmra.mxu0 %v143
    %v214 = vpop.f32.mrf.mxu0
    %v215 = vadd.f32 %v139, %v214
    %v216 = vpop.f32.mrf.mxu0
    %217 = vmatprep.mubr.f32.mxu0 0.0
    %218 = vmatmul.mubr.f32.gmra.mxu0 %v146
    %v219 = vpop.f32.mrf.mxu0
    %v220 = vadd.f32 %v139, %v219
    %v221 = vpop.f32.mrf.mxu0
    %222 = vdwg.mxu0
    %223 = vst.msk [vmem:[#allocation2] sm:$0xff] %vm34, %v215
    %224 = vst.msk [vmem:[#allocation2 + $0x8] sm:$0xff] %vm34, %v220
    // Predicated region
    $region22: #{tpu_custom_call.1} parent=1 // pred_check
      _
    $region23: #{tpu_custom_call.1} parent=1 // pred_check_branch
      %226 = sbr.rel (0) target = $region25
    $region24: #{tpu_custom_call.1} parent=1 // pred_region
      %s228 = ssub.s32 256, 256
      %229 = vsyncadd [#allocation3], %s228
      %s230 = sshll.u32 [#allocation2], 4
      %s231 = int_to_ptr.vmem [resolvable:$true] %s230
      %236 = dma.vmem_to_hbm [thread:$0]  %s231, 256, %s5, [#allocation3], 128, 128, 8
    $region25: #{tpu_custom_call.1} parent=1 // pred_fallthru
      _
    // Predicated region
    $region26: #{tpu_custom_call.1} parent=1 // pred_check
      _
    $region27: #{tpu_custom_call.1} parent=1 // pred_check_branch
      %238 = sbr.rel (0) target = $region29
    $region28: #{tpu_custom_call.1} parent=1 // pred_region
      %239 = dma.done [#allocation3], 256
    $region29: #{tpu_custom_call.1} parent=1 // pred_fallthru
      _
    %240 = vsyncpa [#allocation3], 1

</llo_original>
